<compile_context>
chip_gen: v5e
topology: v5e:2x2
jax: 0.10.0
libtpu: 0.0.40
codegen_flags: <defaults>
</compile_context>

<pallas_src>
import math

import jax
import jax.numpy as jnp
from jax.experimental import pallas as pl
from jax.experimental.pallas import tpu as pltpu

_LANE = 128      # lane width: last dims padded to multiples of this
_SUBLANE = 8     # sublane granularity for the batch tile
_MAX_TB = 512    # upper bound on rows per batch tile
_VMEM_BUDGET = 48 * 1024 * 1024   # conservative budget (v7x has 64 MiB total)


def _round_up(x: int, m: int) -> int:
    return (x + m - 1) // m * m


def _mlp_kernel(x_ref, w1_ref, b1_ref, w2_ref, b2_ref, o_ref):
    """Fused  y = ReLU(x @ W1 + b1) @ W2 + b2  for one batch tile.

    x / W1 / W2 arrive in the MXU-native compute dtype (bf16 by default);
    both matmuls accumulate in f32, bias-add and ReLU run in f32 on the VPU.
    """
    h = jnp.dot(x_ref[...], w1_ref[...],
                preferred_element_type=jnp.float32)        # (tb, d_hid_p) f32
    h = jnp.maximum(h + b1_ref[...], 0.0)                  # bias + ReLU in f32
    y = jnp.dot(h.astype(w2_ref.dtype), w2_ref[...],
                preferred_element_type=jnp.float32)        # (tb, d_out_p) f32
    o_ref[...] = (y + b2_ref[...]).astype(o_ref.dtype)


def _choose_batch_tile(B, d_in_p, d_hid_p, d_out_p, cbytes, obytes):
    """Biggest batch tile (multiple of 8, <= _MAX_TB) whose working set fits
    the VMEM budget alongside the resident (double-buffered) weights."""
    b8 = _round_up(B, _SUBLANE)
    fixed = (2 * (d_in_p * d_hid_p + d_hid_p * d_out_p) * cbytes   # W1/W2 x2 bufs
             + 2 * (d_hid_p + d_out_p) * 4)                        # biases x2 bufs
    per_row = (2 * d_in_p * cbytes      # x tile, double-buffered
               + d_hid_p * 4            # live hidden slab (f32)
               + 2 * d_out_p * obytes)  # out tile, double-buffered
    tb = min(b8, _MAX_TB)
    while tb > _SUBLANE and fixed + tb * per_row > _VMEM_BUDGET:
        tb = _round_up(tb // 2, _SUBLANE)
    return tb


def nonlinear_forward(x, w1, b1, w2, b2, *, batch_tile=None,
                      compute_dtype=jnp.bfloat16):
    """x: (B, D_in); w1: (D_in, D_hid); b1: (D_hid,); w2: (D_hid, D_out); b2: (D_out,)."""
    B, d_in = x.shape
    d_hid = w1.shape[1]
    d_out = w2.shape[1]
    out_dtype = x.dtype

    # ---- lane-dense / MXU-aligned padding (zero padding is exact) ----------
    d_in_p = _round_up(d_in, _LANE)
    d_hid_p = _round_up(d_hid, _LANE)
    d_out_p = _round_up(d_out, _LANE)

    cbytes = jnp.dtype(compute_dtype).itemsize
    obytes = jnp.dtype(out_dtype).itemsize

    # ---- batch tile: multiple of 8, biggest that fits the VMEM budget ------
    if batch_tile is None:
        tb = _choose_batch_tile(B, d_in_p, d_hid_p, d_out_p, cbytes, obytes)
    else:
        tb = batch_tile
        assert tb % _SUBLANE == 0, "batch_tile must be a multiple of 8"
    grid = (pl.cdiv(B, tb),)
    B_pad = grid[0] * tb

    # ---- pad + cast inputs --------------------------------------------------
    x_p = jnp.zeros((B_pad, d_in_p), compute_dtype).at[:B, :d_in].set(
        x.astype(compute_dtype))
    w1_p = jnp.zeros((d_in_p, d_hid_p), compute_dtype).at[:d_in, :d_hid].set(
        w1.astype(compute_dtype))
    w2_p = jnp.zeros((d_hid_p, d_out_p), compute_dtype).at[:d_hid, :d_out].set(
        w2.astype(compute_dtype))
    b1_p = jnp.zeros((1, d_hid_p), jnp.float32).at[0, :d_hid].set(
        b1.astype(jnp.float32))
    b2_p = jnp.zeros((1, d_out_p), jnp.float32).at[0, :d_out].set(
        b2.astype(jnp.float32))

    # ---- VMEM limit: measured need + headroom, capped for v7x (64 MiB) -----
    vmem_needed = (
        2 * tb * d_in_p * cbytes                                   # x tile (x2 bufs)
        + 2 * (d_in_p * d_hid_p + d_hid_p * d_out_p) * cbytes      # weights (x2 bufs)
        + 2 * (d_hid_p + d_out_p) * 4                              # biases
        + tb * d_hid_p * 4                                         # live hidden slab
        + 2 * tb * d_out_p * obytes                                # out tile (x2 bufs)
    )
    vmem_limit = int(min(64 * 1024 * 1024,
                         max(32 * 1024 * 1024, 2 * vmem_needed)))

    # ---- advisory cost estimate for the XLA scheduler -----------------------
    flops = 2 * B_pad * d_in_p * d_hid_p + 2 * B_pad * d_hid_p * d_out_p
    bytes_accessed = (x_p.size * cbytes + w1_p.size * cbytes + w2_p.size * cbytes
                      + b1_p.size * 4 + b2_p.size * 4 + B_pad * d_out_p * obytes)
    cost = pl.CostEstimate(flops=int(flops), transcendentals=0,
                           bytes_accessed=int(bytes_accessed))

    # TODO(synk): for very large d_in/d_hid where resident bf16 weights exceed
    # the v7x 64 MiB VMEM budget, add a K-reduction grid axis ("arbitrary")
    # with an f32 accumulator scratch instead of holding W1/W2 fully resident.
    out = pl.pallas_call(
        _mlp_kernel,
        out_shape=jax.ShapeDtypeStruct((B_pad, d_out_p), out_dtype),
        grid_spec=pltpu.PrefetchScalarGridSpec(
            num_scalar_prefetch=0,
            grid=grid,
            in_specs=[
                pl.BlockSpec((tb, d_in_p), lambda i: (i, 0)),        # x tile
                pl.BlockSpec((d_in_p, d_hid_p), lambda i: (0, 0)),   # w1 (resident)
                pl.BlockSpec((1, d_hid_p), lambda i: (0, 0)),        # b1
                pl.BlockSpec((d_hid_p, d_out_p), lambda i: (0, 0)),  # w2 (resident)
                pl.BlockSpec((1, d_out_p), lambda i: (0, 0)),        # b2
            ],
            out_specs=pl.BlockSpec((tb, d_out_p), lambda i: (i, 0)),
        ),
        compiler_params=pltpu.CompilerParams(
            dimension_semantics=("parallel",),
            vmem_limit_bytes=vmem_limit,
        ),
        cost_estimate=cost,
    )(x_p, w1_p, b1_p, w2_p, b2_p)

    return out[:B, :d_out]


def init_nonlinear_params(key, input_dim, hidden_dim, output_dim, dtype=jnp.float32):
    """Xavier-uniform with gain = calculate_gain('relu') = sqrt(2), zero biases
    (matches the PyTorch __init__)."""
    gain = math.sqrt(2.0)
    k1, k2 = jax.random.split(key)

    def xavier(k, fan_in, fan_out):
        bound = gain * math.sqrt(6.0 / (fan_in + fan_out))
        # Stored as (in, out): transpose of PyTorch's (out, in) weight.
        return jax.random.uniform(k, (fan_in, fan_out), dtype=dtype,
                                  minval=-bound, maxval=bound)

    w1 = xavier(k1, input_dim, hidden_dim)
    b1 = jnp.zeros((hidden_dim,), dtype=dtype)
    w2 = xavier(k2, hidden_dim, output_dim)
    b2 = jnp.zeros((output_dim,), dtype=dtype)
    return w1, b1, w2, b2


if __name__ == "__main__":
    key = jax.random.PRNGKey(0)
    k_x, k_p = jax.random.split(key)

    batch, input_dim, hidden_dim, output_dim = 64, 16, 32, 8

    x = jax.random.normal(k_x, (batch, input_dim), dtype=jnp.float32)
    w1, b1, w2, b2 = init_nonlinear_params(k_p, input_dim, hidden_dim, output_dim)

    out = jax.block_until_ready(nonlinear_forward(x, w1, b1, w2, b2))
    assert out.shape == (batch, output_dim)

    # Reference with the same bf16 MXU inputs / f32 accumulation as the kernel.
    xb, w1b, w2b = (t.astype(jnp.bfloat16) for t in (x, w1, w2))
    h_ref = jnp.maximum(
        jnp.dot(xb, w1b, preferred_element_type=jnp.float32) + b1, 0.0)
    ref_bf16 = jnp.dot(h_ref.astype(jnp.bfloat16), w2b,
                       preferred_element_type=jnp.float32) + b2
    assert jnp.allclose(out, ref_bf16, atol=1e-2, rtol=1e-2), float(
        jnp.max(jnp.abs(out - ref_bf16)))

    # Loose sanity check against the pure-f32 math of the PyTorch module.
    ref_f32 = jnp.maximum(x @ w1 + b1, 0.0) @ w2 + b2
    assert jnp.allclose(out, ref_f32, atol=1e-1, rtol=5e-2)

    print("KERNEL_OK")
</pallas_src>

<mosaic_0001>
module attributes {stable_mosaic.version = 11 : i64} {
  func.func @_mlp_kernel(%arg0: i32, %arg1: memref<64x128xbf16, #tpu.memory_space<vmem>>, %arg2: memref<128x128xbf16, #tpu.memory_space<vmem>>, %arg3: memref<1x128xf32, #tpu.memory_space<vmem>>, %arg4: memref<128x128xbf16, #tpu.memory_space<vmem>>, %arg5: memref<1x128xf32, #tpu.memory_space<vmem>>, %arg6: memref<64x128xf32, #tpu.memory_space<vmem>>) attributes {dimension_semantics = [#tpu.dimension_semantics<parallel>], iteration_bounds = array<i64: 1>, scalar_prefetch = 0 : i64, scratch_operands = 0 : i64, tpu.core_type = #tpu.core_type<tc>, window_params = [{transform_indices = @transform_0, window_bounds = array<i64: 64, 128>}, {pipeline_mode = #tpu.pipeline_mode<synchronous>, transform_indices = @transform_1, window_bounds = array<i64: 128, 128>}, {pipeline_mode = #tpu.pipeline_mode<synchronous>, transform_indices = @transform_2, window_bounds = array<i64: 1, 128>}, {pipeline_mode = #tpu.pipeline_mode<synchronous>, transform_indices = @transform_3, window_bounds = array<i64: 128, 128>}, {pipeline_mode = #tpu.pipeline_mode<synchronous>, transform_indices = @transform_4, window_bounds = array<i64: 1, 128>}, {transform_indices = @transform_5, window_bounds = array<i64: 64, 128>}]} {
    %c0 = arith.constant 0 : index
    %c0_0 = arith.constant 0 : index
    %0 = vector.load %arg1[%c0, %c0_0] : memref<64x128xbf16, #tpu.memory_space<vmem>>, vector<64x128xbf16>
    %c0_1 = arith.constant 0 : index
    %c0_2 = arith.constant 0 : index
    %1 = vector.load %arg2[%c0_1, %c0_2] : memref<128x128xbf16, #tpu.memory_space<vmem>>, vector<128x128xbf16>
    %cst = arith.constant dense<0.000000e+00> : vector<64x128xf32>
    %2 = tpu.matmul %0, %1, %cst {dimension_numbers = #tpu.dot_dimension_numbers<[1], [0], [0], [1], [0, 0, 1, 1], [], []>} : vector<64x128xbf16>, vector<128x128xbf16>, vector<64x128xf32> -> vector<64x128xf32>
    %c0_3 = arith.constant 0 : index
    %c0_4 = arith.constant 0 : index
    %3 = vector.load %arg3[%c0_3, %c0_4] : memref<1x128xf32, #tpu.memory_space<vmem>>, vector<1x128xf32>
    %4 = vector.broadcast %3 : vector<1x128xf32> to vector<64x128xf32>
    %5 = arith.addf %2, %4 : vector<64x128xf32>
    %cst_5 = arith.constant 0.000000e+00 : f32
    %6 = vector.broadcast %cst_5 : f32 to vector<64x128xf32>
    %7 = arith.maximumf %5, %6 : vector<64x128xf32>
    %8 = arith.truncf %7 : vector<64x128xf32> to vector<64x128xbf16>
    %c0_6 = arith.constant 0 : index
    %c0_7 = arith.constant 0 : index
    %9 = vector.load %arg4[%c0_6, %c0_7] : memref<128x128xbf16, #tpu.memory_space<vmem>>, vector<128x128xbf16>
    %cst_8 = arith.constant dense<0.000000e+00> : vector<64x128xf32>
    %10 = tpu.matmul %8, %9, %cst_8 {dimension_numbers = #tpu.dot_dimension_numbers<[1], [0], [0], [1], [0, 0, 1, 1], [], []>} : vector<64x128xbf16>, vector<128x128xbf16>, vector<64x128xf32> -> vector<64x128xf32>
    %c0_9 = arith.constant 0 : index
    %c0_10 = arith.constant 0 : index
    %11 = vector.load %arg5[%c0_9, %c0_10] : memref<1x128xf32, #tpu.memory_space<vmem>>, vector<1x128xf32>
    %12 = vector.broadcast %11 : vector<1x128xf32> to vector<64x128xf32>
    %13 = arith.addf %10, %12 : vector<64x128xf32>
    %c0_11 = arith.constant 0 : index
    %c0_12 = arith.constant 0 : index
    %14 = vector.load %arg6[%c0_11, %c0_12] : memref<64x128xf32, #tpu.memory_space<vmem>>, vector<64x128xf32>
    tpu.vector_store %arg6[%c0_11, %c0_12], %13 {strides = array<i32>} : memref<64x128xf32, #tpu.memory_space<vmem>>, vector<64x128xf32>,
    return
  }
  func.func @transform_0(%arg0: i32) -> (i32, i32) {
    %c0_i32 = arith.constant 0 : i32
    %c0_i32_0 = arith.constant 0 : i32
    return %arg0, %c0_i32 : i32, i32
  }
  func.func @transform_1(%arg0: i32) -> (i32, i32) {
    %c0_i32 = arith.constant 0 : i32
    %c0_i32_0 = arith.constant 0 : i32
    %c0_i32_1 = arith.constant 0 : i32
    return %c0_i32, %c0_i32_0 : i32, i32
  }
  func.func @transform_2(%arg0: i32) -> (i32, i32) {
    %c0_i32 = arith.constant 0 : i32
    %c0_i32_0 = arith.constant 0 : i32
    %c0_i32_1 = arith.constant 0 : i32
    return %c0_i32, %c0_i32_0 : i32, i32
  }
  func.func @transform_3(%arg0: i32) -> (i32, i32) {
    %c0_i32 = arith.constant 0 : i32
    %c0_i32_0 = arith.constant 0 : i32
    %c0_i32_1 = arith.constant 0 : i32
    return %c0_i32, %c0_i32_0 : i32, i32
  }
  func.func @transform_4(%arg0: i32) -> (i32, i32) {
    %c0_i32 = arith.constant 0 : i32
    %c0_i32_0 = arith.constant 0 : i32
    %c0_i32_1 = arith.constant 0 : i32
    return %c0_i32, %c0_i32_0 : i32, i32
  }
  func.func @transform_5(%arg0: i32) -> (i32, i32) {
    %c0_i32 = arith.constant 0 : i32
    %c0_i32_0 = arith.constant 0 : i32
    return %arg0, %c0_i32 : i32, i32
  }
}

</mosaic_0001>

<llo_original>
// kernel: tpu_custom_call.1
$region0: #{tpu_custom_call.1}
  #allocation0 [shape = 'u32[]', space=smem, size = 0x4, offset = 0x4, fixed_abs, tag = 'smem constant byte address 0x4 - core index']
  #allocation1 [shape = 'u32[72,128]{1,0:T(1,128)}', space=vmem, size = 0x9000, scoped, tag = 'internal scratch']
  %s0 = inlined_call_operand.hbm [shape: bf16[64,128], index: 0, kind: input, shape index: {}]
  %s1 = inlined_call_operand.hbm [shape: bf16[128,128], index: 1, kind: input, shape index: {}]
  %s2 = inlined_call_operand.vmem [shape: f32[1,128], index: 2, kind: input, shape index: {}]
  %s3 = inlined_call_operand.hbm [shape: bf16[128,128], index: 3, kind: input, shape index: {}]
  %s4 = inlined_call_operand.vmem [shape: f32[1,128], index: 4, kind: input, shape index: {}]
  %s5 = inlined_call_operand.hbm [shape: f32[64,128], index: 5, kind: output, shape index: {}]
  %s6 = sld [smem:[#allocation0]]
  $region42: #{tpu_custom_call.1} parent=0
    _
  %s8 = ssub.s32 1, %s6
  %s9 = scalar_select 0, %s8, %s6
  $region1: #{tpu_custom_call.1} parent=0
    #allocation2 [shape = 'u8[16384]{0}', space=vmem, size = 0x4000, scoped, tag = 'input window, operand 0, single buffered']
    #allocation3 [shape = 's32[1]{0}', space=sflag, size = 0x4, scoped, tag = 'scoped memory for tpu_custom_call.1']
    #allocation4 [shape = 's32[1]{0}', space=sflag, size = 0x4, scoped, tag = 'scoped memory for tpu_custom_call.1']
    #allocation5 [shape = 'u8[32768]{0}', space=vmem, size = 0x8000, scoped, tag = 'input window, operand 1, single buffered']
    #allocation6 [shape = 's32[1]{0}', space=sflag, size = 0x4, scoped, tag = 'scoped memory for tpu_custom_call.1']
    #allocation7 [shape = 'u8[32768]{0}', space=vmem, size = 0x8000, scoped, tag = 'input window, operand 3, single buffered']
    #allocation8 [shape = 'u8[32768]{0}', space=vmem, size = 0x8000, scoped, tag = 'output window, operand 0, single buffered']
    %10 = vsyncpa [#allocation3], 0
    %11 = vsyncpa [#allocation6], 0
    %12 = vsyncpa [#allocation4], 0
    // Predicated region
    $region2: #{tpu_custom_call.1} parent=1 // pred_check
      _
    $region3: #{tpu_custom_call.1} parent=1 // pred_check_branch
      %14 = sbr.rel (0) target = $region5
    $region4: #{tpu_custom_call.1} parent=1 // pred_region
      %16 = vsyncadd [#allocation3], 0
      %s17 = sshll.u32 %s0, 4
      %s18 = int_to_ptr.hbm [resolvable:$true] %s17
      %s19 = sshll.u32 [#allocation2], 4
      %s20 = int_to_ptr.vmem [resolvable:$true] %s19
      %25 = dma.hbm_to_vmem [thread:$0]  %s18, 512, %s20, [#allocation3], 64, 64, 4
    $region5: #{tpu_custom_call.1} parent=1 // pred_fallthru
      _
    // Predicated region
    $region6: #{tpu_custom_call.1} parent=1 // pred_check
      _
    $region7: #{tpu_custom_call.1} parent=1 // pred_check_branch
      %27 = sbr.rel (0) target = $region9
    $region8: #{tpu_custom_call.1} parent=1 // pred_region
      %29 = vsyncadd [#allocation6], 0
      %s30 = sshll.u32 %s1, 4
      %s31 = int_to_ptr.hbm [resolvable:$true] %s30
      %s32 = sshll.u32 [#allocation5], 4
      %s33 = int_to_ptr.vmem [resolvable:$true] %s32
      %38 = dma.hbm_to_vmem [thread:$0]  %s31, 1024, %s33, [#allocation6], 64, 64, 4
    $region9: #{tpu_custom_call.1} parent=1 // pred_fallthru
      _
    // Predicated region
    $region10: #{tpu_custom_call.1} parent=1 // pred_check
      _
    $region11: #{tpu_custom_call.1} parent=1 // pred_check_branch
      %40 = sbr.rel (0) target = $region13
    $region12: #{tpu_custom_call.1} parent=1 // pred_region
      _
    $region13: #{tpu_custom_call.1} parent=1 // pred_fallthru
      _
    // Predicated region
    $region14: #{tpu_custom_call.1} parent=1 // pred_check
      _
    $region15: #{tpu_custom_call.1} parent=1 // pred_check_branch
      %42 = sbr.rel (0) target = $region17
    $region16: #{tpu_custom_call.1} parent=1 // pred_region
      %44 = vsyncadd [#allocation6], 0
      %s45 = sshll.u32 %s3, 4
      %s46 = int_to_ptr.hbm [resolvable:$true] %s45
      %s47 = sshll.u32 [#allocation7], 4
      %s48 = int_to_ptr.vmem [resolvable:$true] %s47
      %53 = dma.hbm_to_vmem [thread:$0]  %s46, 1024, %s48, [#allocation6], 64, 64, 4
    $region17: #{tpu_custom_call.1} parent=1 // pred_fallthru
      _
    // Predicated region
    $region18: #{tpu_custom_call.1} parent=1 // pred_check
      _
    $region19: #{tpu_custom_call.1} parent=1 // pred_check_branch
      %55 = sbr.rel (0) target = $region21
    $region20: #{tpu_custom_call.1} parent=1 // pred_region
      _
    $region21: #{tpu_custom_call.1} parent=1 // pred_fallthru
      _
    // Predicated region
    $region22: #{tpu_custom_call.1} parent=1 // pred_check
      _
    $region23: #{tpu_custom_call.1} parent=1 // pred_check_branch
      %57 = sbr.rel (0) target = $region25
    $region24: #{tpu_custom_call.1} parent=1 // pred_region
      %59 = dma.done [#allocation3], 512
    $region25: #{tpu_custom_call.1} parent=1 // pred_fallthru
      _
    // Predicated region
    $region26: #{tpu_custom_call.1} parent=1 // pred_check
      _
    $region27: #{tpu_custom_call.1} parent=1 // pred_check_branch
      %61 = sbr.rel (0) target = $region29
    $region28: #{tpu_custom_call.1} parent=1 // pred_region
      %63 = dma.done [#allocation6], 1024
    $region29: #{tpu_custom_call.1} parent=1 // pred_fallthru
      _
    // Predicated region
    $region30: #{tpu_custom_call.1} parent=1 // pred_check
      _
    $region31: #{tpu_custom_call.1} parent=1 // pred_check_branch
      %65 = sbr.rel (0) target = $region33
    $region32: #{tpu_custom_call.1} parent=1 // pred_region
      %67 = dma.done [#allocation6], 1024
    $region33: #{tpu_custom_call.1} parent=1 // pred_fallthru
      _
    %v68 = vld [vmem:[#allocation2] sm:$0xf]
    %v69 = vld [vmem:[#allocation2 + $0x4] sm:$0xf]
    %v70 = vld [vmem:[#allocation2 + $0x8] sm:$0xf]
    %v71 = vld [vmem:[#allocation2 + $0xc] sm:$0xf]
    %v72 = vld [vmem:[#allocation2 + $0x10] sm:$0xf]
    %v73 = vld [vmem:[#allocation2 + $0x14] sm:$0xf]
    %v74 = vld [vmem:[#allocation2 + $0x18] sm:$0xf]
    %v75 = vld [vmem:[#allocation2 + $0x1c] sm:$0xf]
    %v76 = vld [vmem:[#allocation5] sm:$0xf]
    %v77 = vld [vmem:[#allocation5 + $0x4] sm:$0xf]
    %v78 = vld [vmem:[#allocation5 + $0x8] sm:$0xf]
    %v79 = vld [vmem:[#allocation5 + $0xc] sm:$0xf]
    %v80 = vld [vmem:[#allocation5 + $0x10] sm:$0xf]
    %v81 = vld [vmem:[#allocation5 + $0x14] sm:$0xf]
    %v82 = vld [vmem:[#allocation5 + $0x18] sm:$0xf]
    %v83 = vld [vmem:[#allocation5 + $0x1c] sm:$0xf]
    %v84 = vld [vmem:[#allocation5 + $0x20] sm:$0xf]
    %v85 = vld [vmem:[#allocation5 + $0x24] sm:$0xf]
    %v86 = vld [vmem:[#allocation5 + $0x28] sm:$0xf]
    %v87 = vld [vmem:[#allocation5 + $0x2c] sm:$0xf]
    %v88 = vld [vmem:[#allocation5 + $0x30] sm:$0xf]
    %v89 = vld [vmem:[#allocation5 + $0x34] sm:$0xf]
    %v90 = vld [vmem:[#allocation5 + $0x38] sm:$0xf]
    %v91 = vld [vmem:[#allocation5 + $0x3c] sm:$0xf]
    %v92 = vld [vmem:[%s2] sm:$0x1]
    %v94 = vperm.slane %v92, 0
    %v104 = vunpack.c.l.b16 %v68
    %v105 = vunpack.c.l.b16 %v69
    %v106 = vunpack.c.l.b16 %v70
    %v107 = vunpack.c.l.b16 %v71
    %v108 = vunpack.c.l.b16 %v72
    %v109 = vunpack.c.l.b16 %v73
    %v110 = vunpack.c.l.b16 %v74
    %v111 = vunpack.c.l.b16 %v75
    %v112 = vpack.c.b16 %v105, %v104
    %v113 = vpack.c.b16 %v107, %v106
    %v114 = vpack.c.b16 %v109, %v108
    %v115 = vpack.c.b16 %v111, %v110
    %v136 = vunpack.c.l.b16 %v76
    %v137 = vunpack.c.l.b16 %v77
    %v138 = vunpack.c.l.b16 %v78
    %v139 = vunpack.c.l.b16 %v79
    %v140 = vunpack.c.l.b16 %v80
    %v141 = vunpack.c.l.b16 %v81
    %v142 = vunpack.c.l.b16 %v82
    %v143 = vunpack.c.l.b16 %v83
    %v144 = vunpack.c.l.b16 %v84
    %v145 = vunpack.c.l.b16 %v85
    %v146 = vunpack.c.l.b16 %v86
    %v147 = vunpack.c.l.b16 %v87
    %v148 = vunpack.c.l.b16 %v88
    %v149 = vunpack.c.l.b16 %v89
    %v150 = vunpack.c.l.b16 %v90
    %v151 = vunpack.c.l.b16 %v91
    %v152 = vpack.c.b16 %v137, %v136
    %v153 = vpack.c.b16 %v139, %v138
    %v154 = vpack.c.b16 %v141, %v140
    %v155 = vpack.c.b16 %v143, %v142
    %v156 = vpack.c.b16 %v145, %v144
    %v157 = vpack.c.b16 %v147, %v146
    %v158 = vpack.c.b16 %v149, %v148
    %v159 = vpack.c.b16 %v151, %v150
    %168 = vmatpush.bf16.msra.mxu0 %v159
    %169 = vmatpush.bf16.msra.mxu0 %v158
    %170 = vmatpush.bf16.msra.mxu0 %v157
    %171 = vmatpush.bf16.msra.mxu0 %v156
    %172 = vmatpush.bf16.msra.mxu0 %v155
    %173 = vmatpush.bf16.msra.mxu0 %v154
    %174 = vmatpush.bf16.msra.mxu0 %v153
    %175 = vmatpush.bf16.msra.mxu0 %v152
    %176 = vmatmul.bf16.gmra.mxu0 %v112
    %v177 = vpop.f32.mrf.mxu0
    %v178 = vadd.f32 %v94, %v177
    %v179 = vpop.f32.mrf.mxu0
    %v180 = vadd.f32 %v94, %v179
    %181 = vmatmul.bf16.gmra.mxu0 %v113
    %v182 = vpop.f32.mrf.mxu0
    %v183 = vadd.f32 %v94, %v182
    %v184 = vpop.f32.mrf.mxu0
    %v185 = vadd.f32 %v94, %v184
    %186 = vmatmul.bf16.gmra.mxu0 %v114
    %v187 = vpop.f32.mrf.mxu0
    %v188 = vadd.f32 %v94, %v187
    %v189 = vpop.f32.mrf.mxu0
    %v190 = vadd.f32 %v94, %v189
    %191 = vmatmul.bf16.gmra.mxu0 %v115
    %v192 = vpop.f32.mrf.mxu0
    %v193 = vadd.f32 %v94, %v192
    %v194 = vpop.f32.mrf.mxu0
    %v195 = vadd.f32 %v94, %v194
    %196 = vdwg.mxu0
    %v197 = vmax.f32 %v178, 0.0
    %v198 = vmax.f32 %v180, 0.0
    %v199 = vmax.f32 %v183, 0.0
    %v200 = vmax.f32 %v185, 0.0
    %v201 = vmax.f32 %v188, 0.0
    %v202 = vmax.f32 %v190, 0.0
    %v203 = vmax.f32 %v193, 0.0
    %v204 = vmax.f32 %v195, 0.0
    %v205 = vpack.c.bf16 %v198, %v197
    %v206 = vpack.c.bf16 %v200, %v199
    %v207 = vpack.c.bf16 %v202, %v201
    %v208 = vpack.c.bf16 %v204, %v203
    %v209 = vld [vmem:[#allocation7] sm:$0xf]
    %v210 = vld [vmem:[#allocation7 + $0x4] sm:$0xf]
    %v211 = vld [vmem:[#allocation7 + $0x8] sm:$0xf]
    %v212 = vld [vmem:[#allocation7 + $0xc] sm:$0xf]
    %v213 = vld [vmem:[#allocation7 + $0x10] sm:$0xf]
    %v214 = vld [vmem:[#allocation7 + $0x14] sm:$0xf]
    %v215 = vld [vmem:[#allocation7 + $0x18] sm:$0xf]
    %v216 = vld [vmem:[#allocation7 + $0x1c] sm:$0xf]
    %v217 = vld [vmem:[#allocation7 + $0x20] sm:$0xf]
    %v218 = vld [vmem:[#allocation7 + $0x24] sm:$0xf]
    %v219 = vld [vmem:[#allocation7 + $0x28] sm:$0xf]
    %v220 = vld [vmem:[#allocation7 + $0x2c] sm:$0xf]
    %v221 = vld [vmem:[#allocation7 + $0x30] sm:$0xf]
    %v222 = vld [vmem:[#allocation7 + $0x34] sm:$0xf]
    %v223 = vld [vmem:[#allocation7 + $0x38] sm:$0xf]
    %v224 = vld [vmem:[#allocation7 + $0x3c] sm:$0xf]
    %v225 = vld [vmem:[%s4] sm:$0x1]
    %v227 = vperm.slane %v225, 0
    %v245 = vunpack.c.l.b16 %v209
    %v246 = vunpack.c.l.b16 %v210
    %v247 = vunpack.c.l.b16 %v211
    %v248 = vunpack.c.l.b16 %v212
    %v249 = vunpack.c.l.b16 %v213
    %v250 = vunpack.c.l.b16 %v214
    %v251 = vunpack.c.l.b16 %v215
    %v252 = vunpack.c.l.b16 %v216
    %v253 = vunpack.c.l.b16 %v217
    %v254 = vunpack.c.l.b16 %v218
    %v255 = vunpack.c.l.b16 %v219
    %v256 = vunpack.c.l.b16 %v220
    %v257 = vunpack.c.l.b16 %v221
    %v258 = vunpack.c.l.b16 %v222
    %v259 = vunpack.c.l.b16 %v223
    %v260 = vunpack.c.l.b16 %v224
    %v261 = vpack.c.b16 %v246, %v245
    %v262 = vpack.c.b16 %v248, %v247
    %v263 = vpack.c.b16 %v250, %v249
    %v264 = vpack.c.b16 %v252, %v251
    %v265 = vpack.c.b16 %v254, %v253
    %v266 = vpack.c.b16 %v256, %v255
    %v267 = vpack.c.b16 %v258, %v257
    %v268 = vpack.c.b16 %v260, %v259
    %277 = vmatpush.bf16.msra.mxu0 %v268
    %278 = vmatpush.bf16.msra.mxu0 %v267
    %279 = vmatpush.bf16.msra.mxu0 %v266
    %280 = vmatpush.bf16.msra.mxu0 %v265
    %281 = vmatpush.bf16.msra.mxu0 %v264
    %282 = vmatpush.bf16.msra.mxu0 %v263
    %283 = vmatpush.bf16.msra.mxu0 %v262
    %284 = vmatpush.bf16.msra.mxu0 %v261
    %285 = vmatmul.bf16.gmra.mxu0 %v205
    %v286 = vpop.f32.mrf.mxu0
    %v287 = vadd.f32 %v227, %v286
    %v288 = vpop.f32.mrf.mxu0
    %v289 = vadd.f32 %v227, %v288
    %290 = vmatmul.bf16.gmra.mxu0 %v206
    %v291 = vpop.f32.mrf.mxu0
    %v292 = vadd.f32 %v227, %v291
    %v293 = vpop.f32.mrf.mxu0
    %v294 = vadd.f32 %v227, %v293
    %295 = vmatmul.bf16.gmra.mxu0 %v207
    %v296 = vpop.f32.mrf.mxu0
    %v297 = vadd.f32 %v227, %v296
    %v298 = vpop.f32.mrf.mxu0
    %v299 = vadd.f32 %v227, %v298
    %300 = vmatmul.bf16.gmra.mxu0 %v208
    %v301 = vpop.f32.mrf.mxu0
    %v302 = vadd.f32 %v227, %v301
    %v303 = vpop.f32.mrf.mxu0
    %v304 = vadd.f32 %v227, %v303
    %305 = vdwg.mxu0
    %306 = vst [vmem:[#allocation8] sm:$0xff] %v287
    %307 = vst [vmem:[#allocation8 + $0x8] sm:$0xff] %v289
    %308 = vst [vmem:[#allocation8 + $0x10] sm:$0xff] %v292
    %309 = vst [vmem:[#allocation8 + $0x18] sm:$0xff] %v294
    %310 = vst [vmem:[#allocation8 + $0x20] sm:$0xff] %v297
    %311 = vst [vmem:[#allocation8 + $0x28] sm:$0xff] %v299
    %312 = vst [vmem:[#allocation8 + $0x30] sm:$0xff] %v302
    %313 = vst [vmem:[#allocation8 + $0x38] sm:$0xff] %v304
    // Predicated region
    $region34: #{tpu_custom_call.1} parent=1 // pred_check
      _
    $region35: #{tpu_custom_call.1} parent=1 // pred_check_branch
      %315 = sbr.rel (0) target = $region37
    $region36: #{tpu_custom_call.1} parent=1 // pred_region
      %317 = vsyncadd [#allocation4], 0
      %s318 = sshll.u32 [#allocation8], 4
      %s319 = int_to_ptr.vmem [resolvable:$true] %s318
      %s320 = sshll.u32 %s5, 4
      %s321 = int_to_ptr.hbm [resolvable:$true] %s320
      %326 = dma.vmem_to_hbm [thread:$0]  %s319, 1024, %s321, [#allocation4], 128, 128, 8
    $region37: #{tpu_custom_call.1} parent=1 // pred_fallthru
      _
    // Predicated region
    $region38: #{tpu_custom_call.1} parent=1 // pred_check
      _
    $region39: #{tpu_custom_call.1} parent=1 // pred_check_branch
      %328 = sbr.rel (0) target = $region41
    $region40: #{tpu_custom_call.1} parent=1 // pred_region
      %330 = dma.done [#allocation4], 1024
    $region41: #{tpu_custom_call.1} parent=1 // pred_fallthru
      _
    %331 = vsyncpa [#allocation3], 1
    %332 = vsyncpa [#allocation6], 1
    %333 = vsyncpa [#allocation4], 1

</llo_original>
